<compile_context>
chip_gen: v7x
topology: tpu7x:2x2x1
jax: 0.10.0
libtpu: 0.0.40
codegen_flags: <defaults>
</compile_context>

<pallas_src>
import functools

import jax
import jax.numpy as jnp
from jax.experimental import pallas as pl
from jax.experimental.pallas import tpu as pltpu


def _round_up(x: int, m: int) -> int:
    return (x + m - 1) // m * m


def _complex_linear_kernel(xs_ref, wre_ref, wim_ref, br_ref, bi_ref,
                           yr_ref, yi_ref, accr_ref, acci_ref):
    # xs: (tm, tk) stacked [xr | xi] slab, w*: (tk, tn), b*: (1, tn), y*: (tm, tn)
    k = pl.program_id(2)

    @pl.when(k == 0)
    def _():
        accr_ref[...] = jnp.zeros_like(accr_ref)
        acci_ref[...] = jnp.zeros_like(acci_ref)

    xs = xs_ref[...]
    accr_ref[...] += jnp.dot(xs, wre_ref[...], preferred_element_type=jnp.float32)
    acci_ref[...] += jnp.dot(xs, wim_ref[...], preferred_element_type=jnp.float32)

    @pl.when(k == pl.num_programs(2) - 1)
    def _():
        yr_ref[...] = accr_ref[...] + br_ref[...]
        yi_ref[...] = acci_ref[...] + bi_ref[...]


def make_packed_params(weight, bias):
    """Split + transpose + stack the complex parameters once (hoist out of hot path).

    weight: (N, K) complex64, bias: (N,) complex64
    Returns (w_re, w_im, b_re, b_im) with w_*: (2K, N) float32, b_*: (1, N) float32.
    """
    wr_t = jnp.real(weight).astype(jnp.float32).T          # (K, N)
    wi_t = jnp.imag(weight).astype(jnp.float32).T          # (K, N)
    w_re = jnp.concatenate([wr_t, -wi_t], axis=0)          # (2K, N)
    w_im = jnp.concatenate([wi_t, wr_t], axis=0)           # (2K, N)
    b_re = jnp.real(bias).astype(jnp.float32).reshape(1, -1)
    b_im = jnp.imag(bias).astype(jnp.float32).reshape(1, -1)
    return w_re, w_im, b_re, b_im


@functools.partial(jax.jit, static_argnames=("tm", "tn", "tk"))
def complex_linear_packed(x, w_re, w_im, b_re, b_im, *, tm=256, tn=512, tk=512):
    """x: (..., K) complex64; packed params from make_packed_params. Returns (..., N) complex64."""
    *lead, K = x.shape
    K2 = w_re.shape[0]          # 2K
    N = w_re.shape[1]
    M = 1
    for d in lead:
        M *= d

    # Per-call x prep: deinterleave real/imag and stack along the contraction dim.
    xr = jnp.real(x).reshape(M, K).astype(jnp.float32)
    xi = jnp.imag(x).reshape(M, K).astype(jnp.float32)
    x_stack = jnp.concatenate([xr, xi], axis=1)             # (M, 2K)

    # Tile sizes: clamp to (padded) problem size; keep tm % 8 == 0, tn/tk % 128 == 0.
    tm_ = min(tm, _round_up(M, 8))
    tn_ = min(tn, _round_up(N, 128))
    tk_ = min(tk, _round_up(K2, 128))

    Mp = _round_up(M, tm_)
    Np = _round_up(N, tn_)
    Kp = _round_up(K2, tk_)

    # Zero-pad so every block is full (padding along K contributes 0 to the dot).
    xs_p = jnp.pad(x_stack, ((0, Mp - M), (0, Kp - K2)))
    wre_p = jnp.pad(w_re, ((0, Kp - K2), (0, Np - N)))
    wim_p = jnp.pad(w_im, ((0, Kp - K2), (0, Np - N)))
    br_p = jnp.pad(b_re, ((0, 0), (0, Np - N)))
    bi_p = jnp.pad(b_im, ((0, 0), (0, Np - N)))

    grid = (Mp // tm_, Np // tn_, Kp // tk_)

    yr, yi = pl.pallas_call(
        _complex_linear_kernel,
        out_shape=(jax.ShapeDtypeStruct((Mp, Np), jnp.float32),
                   jax.ShapeDtypeStruct((Mp, Np), jnp.float32)),
        grid_spec=pltpu.PrefetchScalarGridSpec(
            num_scalar_prefetch=0,
            grid=grid,
            in_specs=[
                pl.BlockSpec((tm_, tk_), lambda i, j, k: (i, k)),   # x_stack
                pl.BlockSpec((tk_, tn_), lambda i, j, k: (k, j)),   # W_re
                pl.BlockSpec((tk_, tn_), lambda i, j, k: (k, j)),   # W_im
                pl.BlockSpec((1, tn_), lambda i, j, k: (0, j)),     # bias_re
                pl.BlockSpec((1, tn_), lambda i, j, k: (0, j)),     # bias_im
            ],
            out_specs=(
                pl.BlockSpec((tm_, tn_), lambda i, j, k: (i, j)),
                pl.BlockSpec((tm_, tn_), lambda i, j, k: (i, j)),
            ),
            scratch_shapes=[
                pltpu.VMEM((tm_, tn_), jnp.float32),
                pltpu.VMEM((tm_, tn_), jnp.float32),
            ],
        ),
        compiler_params=pltpu.CompilerParams(
            dimension_semantics=("parallel", "parallel", "arbitrary")),
    )(xs_p, wre_p, wim_p, br_p, bi_p)

    y = jax.lax.complex(yr[:M, :N], yi[:M, :N])
    return y.reshape(*lead, N)


def complex_linear(x, weight, bias, **tile_kwargs):
    """Complex F.linear: x (..., K) complex64, weight (N, K) complex64, bias (N,) complex64."""
    packed = make_packed_params(weight, bias)
    return complex_linear_packed(x, *packed, **tile_kwargs)


if __name__ == "__main__":
    key = jax.random.PRNGKey(0)
    k1, k2, k3, k4 = jax.random.split(key, 4)

    batch, seq, in_features, out_features = 2, 8, 32, 32

    # Deterministic parameter init mirroring the PyTorch module:
    # weight = complex(randn(N,K)/sqrt(K), randn(N,K)/sqrt(K)), bias = complex zeros.
    scale = 1.0 / jnp.sqrt(jnp.float32(in_features))
    w_real = jax.random.normal(k1, (out_features, in_features), jnp.float32) * scale
    w_imag = jax.random.normal(k2, (out_features, in_features), jnp.float32) * scale
    weight = jax.lax.complex(w_real, w_imag)
    bias = jnp.zeros((out_features,), jnp.complex64)

    x_real = jax.random.normal(k3, (batch, seq, in_features), jnp.float32)
    x_imag = jax.random.normal(k4, (batch, seq, in_features), jnp.float32)
    x = jax.lax.complex(x_real, x_imag)

    y = complex_linear(x, weight, bias)
    jax.block_until_ready(y)

    # Reference check in plain JAX (complex einsum).
    y_ref = jnp.einsum("bsk,nk->bsn", x, weight) + bias
    assert y.shape == (batch, seq, out_features)
    assert y.dtype == jnp.complex64
    assert jnp.allclose(y, y_ref, atol=1e-4, rtol=1e-4)

    print("KERNEL_OK")
</pallas_src>

<mosaic_0001>
module attributes {stable_mosaic.version = 11 : i64} {
  func.func @_complex_linear_kernel(%arg0: i32, %arg1: i32, %arg2: i32, %arg3: memref<16x128xf32, #tpu.memory_space<vmem>>, %arg4: memref<128x128xf32, #tpu.memory_space<vmem>>, %arg5: memref<128x128xf32, #tpu.memory_space<vmem>>, %arg6: memref<1x128xf32, #tpu.memory_space<vmem>>, %arg7: memref<1x128xf32, #tpu.memory_space<vmem>>, %arg8: memref<16x128xf32, #tpu.memory_space<vmem>>, %arg9: memref<16x128xf32, #tpu.memory_space<vmem>>, %arg10: memref<16x128xf32, #tpu.memory_space<vmem>>, %arg11: memref<16x128xf32, #tpu.memory_space<vmem>>) attributes {dimension_semantics = [#tpu.dimension_semantics<parallel>, #tpu.dimension_semantics<parallel>, #tpu.dimension_semantics<arbitrary>], iteration_bounds = array<i64: 1, 1, 1>, scalar_prefetch = 0 : i64, scratch_operands = 2 : i64, tpu.core_type = #tpu.core_type<tc>, window_params = [{transform_indices = @transform_0, window_bounds = array<i64: 16, 128>}, {transform_indices = @transform_1, window_bounds = array<i64: 128, 128>}, {transform_indices = @transform_2, window_bounds = array<i64: 128, 128>}, {transform_indices = @transform_3, window_bounds = array<i64: 1, 128>}, {transform_indices = @transform_4, window_bounds = array<i64: 1, 128>}, {transform_indices = @transform_5, window_bounds = array<i64: 16, 128>}, {transform_indices = @transform_6, window_bounds = array<i64: 16, 128>}]} {
    %c0_i32 = arith.constant 0 : i32
    %0 = arith.cmpi eq, %arg2, %c0_i32 : i32
    %1 = arith.extui %0 : i1 to i32
    %c0_i32_0 = arith.constant 0 : i32
    %2 = arith.cmpi ne, %1, %c0_i32_0 : i32
    scf.if %2 {
      %cst_17 = arith.constant 0.000000e+00 : f32
      %17 = vector.broadcast %cst_17 : f32 to vector<16x128xf32>
      %c0_18 = arith.constant 0 : index
      %c0_19 = arith.constant 0 : index
      %18 = vector.load %arg10[%c0_18, %c0_19] : memref<16x128xf32, #tpu.memory_space<vmem>>, vector<16x128xf32>
      tpu.vector_store %arg10[%c0_18, %c0_19], %17 {strides = array<i32>} : memref<16x128xf32, #tpu.memory_space<vmem>>, vector<16x128xf32>,
      %cst_20 = arith.constant 0.000000e+00 : f32
      %19 = vector.broadcast %cst_20 : f32 to vector<16x128xf32>
      %c0_21 = arith.constant 0 : index
      %c0_22 = arith.constant 0 : index
      %20 = vector.load %arg11[%c0_21, %c0_22] : memref<16x128xf32, #tpu.memory_space<vmem>>, vector<16x128xf32>
      tpu.vector_store %arg11[%c0_21, %c0_22], %19 {strides = array<i32>} : memref<16x128xf32, #tpu.memory_space<vmem>>, vector<16x128xf32>,
    } else {
    }
    %c0 = arith.constant 0 : index
    %c0_1 = arith.constant 0 : index
    %3 = vector.load %arg3[%c0, %c0_1] : memref<16x128xf32, #tpu.memory_space<vmem>>, vector<16x128xf32>
    %c0_2 = arith.constant 0 : index
    %c0_3 = arith.constant 0 : index
    %4 = vector.load %arg10[%c0_2, %c0_3] : memref<16x128xf32, #tpu.memory_space<vmem>>, vector<16x128xf32>
    %c0_4 = arith.constant 0 : index
    %c0_5 = arith.constant 0 : index
    %5 = vector.load %arg4[%c0_4, %c0_5] : memref<128x128xf32, #tpu.memory_space<vmem>>, vector<128x128xf32>
    %cst = arith.constant dense<0.000000e+00> : vector<16x128xf32>
    %6 = tpu.matmul %3, %5, %cst {dimension_numbers = #tpu.dot_dimension_numbers<[1], [0], [0], [1], [0, 0, 1, 1], [], []>} : vector<16x128xf32>, vector<128x128xf32>, vector<16x128xf32> -> vector<16x128xf32>
    %7 = arith.addf %4, %6 : vector<16x128xf32>
    %c0_6 = arith.constant 0 : index
    %c0_7 = arith.constant 0 : index
    %8 = vector.load %arg10[%c0_6, %c0_7] : memref<16x128xf32, #tpu.memory_space<vmem>>, vector<16x128xf32>
    tpu.vector_store %arg10[%c0_6, %c0_7], %7 {strides = array<i32>} : memref<16x128xf32, #tpu.memory_space<vmem>>, vector<16x128xf32>,
    %c0_8 = arith.constant 0 : index
    %c0_9 = arith.constant 0 : index
    %9 = vector.load %arg11[%c0_8, %c0_9] : memref<16x128xf32, #tpu.memory_space<vmem>>, vector<16x128xf32>
    %c0_10 = arith.constant 0 : index
    %c0_11 = arith.constant 0 : index
    %10 = vector.load %arg5[%c0_10, %c0_11] : memref<128x128xf32, #tpu.memory_space<vmem>>, vector<128x128xf32>
    %cst_12 = arith.constant dense<0.000000e+00> : vector<16x128xf32>
    %11 = tpu.matmul %3, %10, %cst_12 {dimension_numbers = #tpu.dot_dimension_numbers<[1], [0], [0], [1], [0, 0, 1, 1], [], []>} : vector<16x128xf32>, vector<128x128xf32>, vector<16x128xf32> -> vector<16x128xf32>
    %12 = arith.addf %9, %11 : vector<16x128xf32>
    %c0_13 = arith.constant 0 : index
    %c0_14 = arith.constant 0 : index
    %13 = vector.load %arg11[%c0_13, %c0_14] : memref<16x128xf32, #tpu.memory_space<vmem>>, vector<16x128xf32>
    tpu.vector_store %arg11[%c0_13, %c0_14], %12 {strides = array<i32>} : memref<16x128xf32, #tpu.memory_space<vmem>>, vector<16x128xf32>,
    %c0_i32_15 = arith.constant 0 : i32
    %14 = arith.cmpi eq, %arg2, %c0_i32_15 : i32
    %15 = arith.extui %14 : i1 to i32
    %c0_i32_16 = arith.constant 0 : i32
    %16 = arith.cmpi ne, %15, %c0_i32_16 : i32
    scf.if %16 {
      %c0_17 = arith.constant 0 : index
      %c0_18 = arith.constant 0 : index
      %17 = vector.load %arg10[%c0_17, %c0_18] : memref<16x128xf32, #tpu.memory_space<vmem>>, vector<16x128xf32>
      %c0_19 = arith.constant 0 : index
      %c0_20 = arith.constant 0 : index
      %18 = vector.load %arg6[%c0_19, %c0_20] : memref<1x128xf32, #tpu.memory_space<vmem>>, vector<1x128xf32>
      %19 = vector.broadcast %18 : vector<1x128xf32> to vector<16x128xf32>
      %20 = arith.addf %17, %19 : vector<16x128xf32>
      %c0_21 = arith.constant 0 : index
      %c0_22 = arith.constant 0 : index
      %21 = vector.load %arg8[%c0_21, %c0_22] : memref<16x128xf32, #tpu.memory_space<vmem>>, vector<16x128xf32>
      tpu.vector_store %arg8[%c0_21, %c0_22], %20 {strides = array<i32>} : memref<16x128xf32, #tpu.memory_space<vmem>>, vector<16x128xf32>,
      %c0_23 = arith.constant 0 : index
      %c0_24 = arith.constant 0 : index
      %22 = vector.load %arg11[%c0_23, %c0_24] : memref<16x128xf32, #tpu.memory_space<vmem>>, vector<16x128xf32>
      %c0_25 = arith.constant 0 : index
      %c0_26 = arith.constant 0 : index
      %23 = vector.load %arg7[%c0_25, %c0_26] : memref<1x128xf32, #tpu.memory_space<vmem>>, vector<1x128xf32>
      %24 = vector.broadcast %23 : vector<1x128xf32> to vector<16x128xf32>
      %25 = arith.addf %22, %24 : vector<16x128xf32>
      %c0_27 = arith.constant 0 : index
      %c0_28 = arith.constant 0 : index
      %26 = vector.load %arg9[%c0_27, %c0_28] : memref<16x128xf32, #tpu.memory_space<vmem>>, vector<16x128xf32>
      tpu.vector_store %arg9[%c0_27, %c0_28], %25 {strides = array<i32>} : memref<16x128xf32, #tpu.memory_space<vmem>>, vector<16x128xf32>,
    } else {
    }
    return
  }
  func.func @transform_0(%arg0: i32, %arg1: i32, %arg2: i32) -> (i32, i32) {
    %c0_i32 = arith.constant 0 : i32
    return %arg0, %arg2 : i32, i32
  }
  func.func @transform_1(%arg0: i32, %arg1: i32, %arg2: i32) -> (i32, i32) {
    %c0_i32 = arith.constant 0 : i32
    return %arg2, %arg1 : i32, i32
  }
  func.func @transform_2(%arg0: i32, %arg1: i32, %arg2: i32) -> (i32, i32) {
    %c0_i32 = arith.constant 0 : i32
    return %arg2, %arg1 : i32, i32
  }
  func.func @transform_3(%arg0: i32, %arg1: i32, %arg2: i32) -> (i32, i32) {
    %c0_i32 = arith.constant 0 : i32
    %c0_i32_0 = arith.constant 0 : i32
    return %c0_i32, %arg1 : i32, i32
  }
  func.func @transform_4(%arg0: i32, %arg1: i32, %arg2: i32) -> (i32, i32) {
    %c0_i32 = arith.constant 0 : i32
    %c0_i32_0 = arith.constant 0 : i32
    return %c0_i32, %arg1 : i32, i32
  }
  func.func @transform_5(%arg0: i32, %arg1: i32, %arg2: i32) -> (i32, i32) {
    %c0_i32 = arith.constant 0 : i32
    return %arg0, %arg1 : i32, i32
  }
  func.func @transform_6(%arg0: i32, %arg1: i32, %arg2: i32) -> (i32, i32) {
    %c0_i32 = arith.constant 0 : i32
    return %arg0, %arg1 : i32, i32
  }
}

</mosaic_0001>

<llo_original>
// kernel: custom-call
$region0: #{custom-call}
  %s0 = inlined_call_operand.hbm [shape: c64[2,8,32], index: 0, kind: input, shape index: {}]
  %s1 = inlined_call_operand.vmem [shape: f32[2,8,32], index: 1, kind: output, shape index: {}]
  $region1: #{custom-call} parent=0
    #allocation0 [shape = 's32[1]{0}', space=sflag, size = 0x4, scoped, tag = 'scoped memory for custom-call']
    %2 = vsyncpa [#allocation0], 0
    %s3 = sshll.u32 %s1, 4
    %s4 = int_to_ptr.vmem [resolvable:$true] %s3
    %6 = dma.hbm_to_vmem [thread:$0]  %s0, 256, %s4, [#allocation0]
    %7 = dma.done [#allocation0], 256
    %8 = vsyncpa [#allocation0], 1

// kernel: custom-call.1
$region0: #{custom-call.1}
  %s0 = inlined_call_operand.hbm [shape: c64[2,8,32], index: 0, kind: input, shape index: {}]
  %s1 = inlined_call_operand.vmem [shape: f32[2,8,32], index: 1, kind: output, shape index: {}]
  %s2 = scalar_lea.hbm %s0, 256
  $region1: #{custom-call.1} parent=0
    #allocation0 [shape = 's32[1]{0}', space=sflag, size = 0x4, scoped, tag = 'scoped memory for custom-call.1']
    %3 = vsyncpa [#allocation0], 0
    %s4 = sshll.u32 %s1, 4
    %s5 = int_to_ptr.vmem [resolvable:$true] %s4
    %7 = dma.hbm_to_vmem [thread:$0]  %s2, 256, %s5, [#allocation0]
    %8 = dma.done [#allocation0], 256
    %9 = vsyncpa [#allocation0], 1

// kernel: custom-call.2
$region0: #{custom-call.2}
  %s0 = inlined_call_operand.vmem [shape: f32[2,8,32], index: 0, kind: input, shape index: {}]
  %s1 = inlined_call_operand.vmem [shape: f32[2,8,32], index: 1, kind: input, shape index: {}]
  %s2 = inlined_call_operand.hbm [shape: c64[2,8,32], index: 2, kind: output, shape index: {}]
  %s3 = scalar_lea.hbm %s2, 256
  $region1: #{custom-call.2} parent=0
    #allocation0 [shape = 's32[1]{0}', space=sflag, size = 0x4, scoped, tag = 'scoped memory for custom-call.2']
    %4 = vsyncpa [#allocation0], 0
    %s5 = sshll.u32 %s0, 4
    %s6 = int_to_ptr.vmem [resolvable:$true] %s5
    %8 = dma.vmem_to_hbm [thread:$0]  %s6, 256, %s2, [#allocation0]
    %9 = dma.done [#allocation0], 256
    %10 = vsyncpa [#allocation0], 1
  $region2: #{custom-call.2} parent=0
    #allocation1 [shape = 's32[1]{0}', space=sflag, size = 0x4, scoped, tag = 'scoped memory for custom-call.2']
    %11 = vsyncpa [#allocation1], 0
    %s12 = sshll.u32 %s1, 4
    %s13 = int_to_ptr.vmem [resolvable:$true] %s12
    %15 = dma.vmem_to_hbm [thread:$0]  %s13, 256, %s3, [#allocation1]
    %16 = dma.done [#allocation1], 256
    %17 = vsyncpa [#allocation1], 1

// kernel: complex_linear_packed.1
$region0: #{complex_linear_packed.1}
  #allocation0 [shape = 'u32[]', space=smem, size = 0x4, offset = 0x4, fixed_abs, tag = 'smem constant byte address 0x4 - core index']
  #allocation1 [shape = 'u32[144,128]{1,0:T(1,128)}', space=vmem, size = 0x12000, scoped, tag = 'internal scratch']
  #allocation2 [shape = 'f32[16,128]{1,0:T(8,128)}', space=vmem, size = 0x2000, scoped, tag = 'scratch operand']
  #allocation3 [shape = 'f32[16,128]{1,0:T(8,128)}', space=vmem, size = 0x2000, scoped, tag = 'scratch operand']
  %s0 = inlined_call_operand.vmem [shape: f32[16,128], index: 0, kind: input, shape index: {}]
  %s1 = inlined_call_operand.vmem [shape: f32[128,128], index: 1, kind: input, shape index: {}]
  %s2 = inlined_call_operand.vmem [shape: f32[128,128], index: 2, kind: input, shape index: {}]
  %s3 = inlined_call_operand.vmem [shape: f32[1,128], index: 3, kind: input, shape index: {}]
  %s4 = inlined_call_operand.vmem [shape: f32[1,128], index: 4, kind: input, shape index: {}]
  %s5 = inlined_call_operand.vmem [shape: f32[16,128], index: 5, kind: output, shape index: {0}]
  %s6 = inlined_call_operand.vmem [shape: f32[16,128], index: 6, kind: output, shape index: {1}]
  %7 = xla_tuple %s5, %s6
  %s8 = sld [smem:[#allocation0]]
  $region46: #{complex_linear_packed.1} parent=0
    _
  %s10 = ssub.s32 1, %s8
  %s11 = scalar_select 0, %s10, %s8
  // Predicated region
  $region2: #{complex_linear_packed.1} parent=0 // pred_check
    _
  $region3: #{complex_linear_packed.1} parent=0 // pred_check_branch
    %13 = sbr.rel (0) target = $region5
  $region4: #{complex_linear_packed.1} parent=0 // pred_region
    _
  $region5: #{complex_linear_packed.1} parent=0 // pred_fallthru
    _
  // Predicated region
  $region6: #{complex_linear_packed.1} parent=0 // pred_check
    _
  $region7: #{complex_linear_packed.1} parent=0 // pred_check_branch
    %15 = sbr.rel (0) target = $region9
  $region8: #{complex_linear_packed.1} parent=0 // pred_region
    _
  $region9: #{complex_linear_packed.1} parent=0 // pred_fallthru
    _
  // Predicated region
  $region10: #{complex_linear_packed.1} parent=0 // pred_check
    _
  $region11: #{complex_linear_packed.1} parent=0 // pred_check_branch
    %17 = sbr.rel (0) target = $region13
  $region12: #{complex_linear_packed.1} parent=0 // pred_region
    _
  $region13: #{complex_linear_packed.1} parent=0 // pred_fallthru
    _
  // Predicated region
  $region14: #{complex_linear_packed.1} parent=0 // pred_check
    _
  $region15: #{complex_linear_packed.1} parent=0 // pred_check_branch
    %19 = sbr.rel (0) target = $region17
  $region16: #{complex_linear_packed.1} parent=0 // pred_region
    _
  $region17: #{complex_linear_packed.1} parent=0 // pred_fallthru
    _
  // Predicated region
  $region18: #{complex_linear_packed.1} parent=0 // pred_check
    _
  $region19: #{complex_linear_packed.1} parent=0 // pred_check_branch
    %21 = sbr.rel (0) target = $region21
  $region20: #{complex_linear_packed.1} parent=0 // pred_region
    _
  $region21: #{complex_linear_packed.1} parent=0 // pred_fallthru
    _
  %p22 = scmp.eq.s32.totalorder 0, 0
  // Predicated region
  $region22: #{complex_linear_packed.1} parent=0 // pred_check
    %p23 = pneg %p22
  $region23: #{complex_linear_packed.1} parent=0 // pred_check_branch
    %25 = sbr.rel (%p23) target = $region25
  $region24: #{complex_linear_packed.1} parent=0 // pred_region
    %26 = vst [vmem:[#allocation2] sm:$0xff] 0.0
    %27 = vst [vmem:[#allocation2 + $0x8] sm:$0xff] 0.0
    %28 = vst [vmem:[#allocation3] sm:$0xff] 0.0
    %29 = vst [vmem:[#allocation3 + $0x8] sm:$0xff] 0.0
  $region25: #{complex_linear_packed.1} parent=0 // pred_fallthru
    _
  %v30 = vld [vmem:[%s0] sm:$0xff]
  %v31 = vld [vmem:[%s0 + $0x8] sm:$0xff]
  %v32 = vld [vmem:[#allocation2] sm:$0xff]
  %v33 = vld [vmem:[#allocation2 + $0x8] sm:$0xff]
  %v34 = vld [vmem:[%s1] sm:$0xff]
  %v35 = vld [vmem:[%s1 + $0x8] sm:$0xff]
  %v36 = vld [vmem:[%s1 + $0x10] sm:$0xff]
  %v37 = vld [vmem:[%s1 + $0x18] sm:$0xff]
  %v38 = vld [vmem:[%s1 + $0x20] sm:$0xff]
  %v39 = vld [vmem:[%s1 + $0x28] sm:$0xff]
  %v40 = vld [vmem:[%s1 + $0x30] sm:$0xff]
  %v41 = vld [vmem:[%s1 + $0x38] sm:$0xff]
  %v42 = vld [vmem:[%s1 + $0x40] sm:$0xff]
  %v43 = vld [vmem:[%s1 + $0x48] sm:$0xff]
  %v44 = vld [vmem:[%s1 + $0x50] sm:$0xff]
  %v45 = vld [vmem:[%s1 + $0x58] sm:$0xff]
  %v46 = vld [vmem:[%s1 + $0x60] sm:$0xff]
  %v47 = vld [vmem:[%s1 + $0x68] sm:$0xff]
  %v48 = vld [vmem:[%s1 + $0x70] sm:$0xff]
  %v49 = vld [vmem:[%s1 + $0x78] sm:$0xff]
  %50 = vmatprep.subr.mxu0 0.0
  %51 = vmatpush1.msra.mxu0 %v34
  %52 = vmatprep.subr.mxu0 0.0
  %53 = vmatpush1.msra.mxu0 %v35
  %54 = vmatprep.subr.mxu0 0.0
  %55 = vmatpush1.msra.mxu0 %v36
  %56 = vmatprep.subr.mxu0 0.0
  %57 = vmatpush1.msra.mxu0 %v37
  %58 = vmatprep.subr.mxu0 0.0
  %59 = vmatpush1.msra.mxu0 %v38
  %60 = vmatprep.subr.mxu0 0.0
  %61 = vmatpush1.msra.mxu0 %v39
  %62 = vmatprep.subr.mxu0 0.0
  %63 = vmatpush1.msra.mxu0 %v40
  %64 = vmatprep.subr.mxu0 0.0
  %65 = vmatpush1.msra.mxu0 %v41
  %66 = vmatprep.subr.mxu0 0.0
  %67 = vmatpush1.msra.mxu0 %v42
  %68 = vmatprep.subr.mxu0 0.0
  %69 = vmatpush1.msra.mxu0 %v43
  %70 = vmatprep.subr.mxu0 0.0
  %71 = vmatpush1.msra.mxu0 %v44
  %72 = vmatprep.subr.mxu0 0.0
  %73 = vmatpush1.msra.mxu0 %v45
  %74 = vmatprep.subr.mxu0 0.0
  %75 = vmatpush1.msra.mxu0 %v46
  %76 = vmatprep.subr.mxu0 0.0
  %77 = vmatpush1.msra.mxu0 %v47
  %78 = vmatprep.subr.mxu0 0.0
  %79 = vmatpush1.msra.mxu0 %v48
  %80 = vmatprep.subr.mxu0 0.0
  %81 = vmatpush1.msra.mxu0 %v49
  %82 = vmatprep.subr.mxu0 0.0
  %83 = vmatpush1.msra.mxu0 0.0
  %84 = vmatprep.subr.mxu0 0.0
  %85 = vmatpush1.msra.mxu0 0.0
  %86 = vmatprep.subr.mxu0 0.0
  %87 = vmatpush1.msra.mxu0 0.0
  %88 = vmatprep.subr.mxu0 0.0
  %89 = vmatpush1.msra.mxu0 0.0
  %90 = vmatprep.subr.mxu0 0.0
  %91 = vmatpush1.msra.mxu0 0.0
  %92 = vmatprep.subr.mxu0 0.0
  %93 = vmatpush1.msra.mxu0 0.0
  %94 = vmatprep.subr.mxu0 0.0
  %95 = vmatpush1.msra.mxu0 0.0
  %96 = vmatprep.subr.mxu0 0.0
  %97 = vmatpush1.msra.mxu0 0.0
  %98 = vmatprep.subr.mxu0 0.0
  %99 = vmatpush1.msra.mxu0 0.0
  %100 = vmatprep.subr.mxu0 0.0
  %101 = vmatpush1.msra.mxu0 0.0
  %102 = vmatprep.subr.mxu0 0.0
  %103 = vmatpush1.msra.mxu0 0.0
  %104 = vmatprep.subr.mxu0 0.0
  %105 = vmatpush1.msra.mxu0 0.0
  %106 = vmatprep.subr.mxu0 0.0
  %107 = vmatpush1.msra.mxu0 0.0
  %108 = vmatprep.subr.mxu0 0.0
  %109 = vmatpush1.msra.mxu0 0.0
  %110 = vmatprep.subr.mxu0 0.0
  %111 = vmatpush1.msra.mxu0 0.0
  %112 = vmatprep.subr.mxu0 0.0
  %113 = vmatpush1.msra.mxu0 0.0
  %114 = vmatprep.mubr.f32.mxu0 0.0
  %115 = vmatmul.mubr.f32.gmra.mrb[0].mxu0 %v30
  %v116 = vpop.f32.mrb[0].mxu0
  %v117 = vadd.f32 0.0, %v116
  %v118 = vpop.f32.mrb[0].mxu0
  %119 = vmatprep.mubr.f32.mxu0 0.0
  %120 = vmatmul.mubr.f32.gmra.mrb[0].mxu0 %v31
  %v121 = vpop.f32.mrb[0].mxu0
  %v122 = vadd.f32 0.0, %v121
  %v123 = vpop.f32.mrb[0].mxu0
  %124 = vdwg.mxu0
  %v125 = vadd.f32 %v32, %v117
  %v126 = vadd.f32 %v33, %v122
  %127 = vst [vmem:[#allocation2] sm:$0xff] %v125
  %128 = vst [vmem:[#allocation2 + $0x8] sm:$0xff] %v126
  %v129 = vld [vmem:[#allocation3] sm:$0xff]
  %v130 = vld [vmem:[#allocation3 + $0x8] sm:$0xff]
  %v131 = vld [vmem:[%s2] sm:$0xff]
  %v132 = vld [vmem:[%s2 + $0x8] sm:$0xff]
  %v133 = vld [vmem:[%s2 + $0x10] sm:$0xff]
  %v134 = vld [vmem:[%s2 + $0x18] sm:$0xff]
  %v135 = vld [vmem:[%s2 + $0x20] sm:$0xff]
  %v136 = vld [vmem:[%s2 + $0x28] sm:$0xff]
  %v137 = vld [vmem:[%s2 + $0x30] sm:$0xff]
  %v138 = vld [vmem:[%s2 + $0x38] sm:$0xff]
  %v139 = vld [vmem:[%s2 + $0x40] sm:$0xff]
  %v140 = vld [vmem:[%s2 + $0x48] sm:$0xff]
  %v141 = vld [vmem:[%s2 + $0x50] sm:$0xff]
  %v142 = vld [vmem:[%s2 + $0x58] sm:$0xff]
  %v143 = vld [vmem:[%s2 + $0x60] sm:$0xff]
  %v144 = vld [vmem:[%s2 + $0x68] sm:$0xff]
  %v145 = vld [vmem:[%s2 + $0x70] sm:$0xff]
  %v146 = vld [vmem:[%s2 + $0x78] sm:$0xff]
  %147 = vmatprep.subr.mxu0 0.0
  %148 = vmatpush1.msra.mxu0 %v131
  %149 = vmatprep.subr.mxu0 0.0
  %150 = vmatpush1.msra.mxu0 %v132
  %151 = vmatprep.subr.mxu0 0.0
  %152 = vmatpush1.msra.mxu0 %v133
  %153 = vmatprep.subr.mxu0 0.0
  %154 = vmatpush1.msra.mxu0 %v134
  %155 = vmatprep.subr.mxu0 0.0
  %156 = vmatpush1.msra.mxu0 %v135
  %157 = vmatprep.subr.mxu0 0.0
  %158 = vmatpush1.msra.mxu0 %v136
  %159 = vmatprep.subr.mxu0 0.0
  %160 = vmatpush1.msra.mxu0 %v137
  %161 = vmatprep.subr.mxu0 0.0
  %162 = vmatpush1.msra.mxu0 %v138
  %163 = vmatprep.subr.mxu0 0.0
  %164 = vmatpush1.msra.mxu0 %v139
  %165 = vmatprep.subr.mxu0 0.0
  %166 = vmatpush1.msra.mxu0 %v140
  %167 = vmatprep.subr.mxu0 0.0
  %168 = vmatpush1.msra.mxu0 %v141
  %169 = vmatprep.subr.mxu0 0.0
  %170 = vmatpush1.msra.mxu0 %v142
  %171 = vmatprep.subr.mxu0 0.0
  %172 = vmatpush1.msra.mxu0 %v143
  %173 = vmatprep.subr.mxu0 0.0
  %174 = vmatpush1.msra.mxu0 %v144
  %175 = vmatprep.subr.mxu0 0.0
  %176 = vmatpush1.msra.mxu0 %v145
  %177 = vmatprep.subr.mxu0 0.0
  %178 = vmatpush1.msra.mxu0 %v146
  %179 = vmatprep.subr.mxu0 0.0
  %180 = vmatpush1.msra.mxu0 0.0
  %181 = vmatprep.subr.mxu0 0.0
  %182 = vmatpush1.msra.mxu0 0.0
  %183 = vmatprep.subr.mxu0 0.0
  %184 = vmatpush1.msra.mxu0 0.0
  %185 = vmatprep.subr.mxu0 0.0
  %186 = vmatpush1.msra.mxu0 0.0
  %187 = vmatprep.subr.mxu0 0.0
  %188 = vmatpush1.msra.mxu0 0.0
  %189 = vmatprep.subr.mxu0 0.0
  %190 = vmatpush1.msra.mxu0 0.0
  %191 = vmatprep.subr.mxu0 0.0
  %192 = vmatpush1.msra.mxu0 0.0
  %193 = vmatprep.subr.mxu0 0.0
  %194 = vmatpush1.msra.mxu0 0.0
  %195 = vmatprep.subr.mxu0 0.0
  %196 = vmatpush1.msra.mxu0 0.0
  %197 = vmatprep.subr.mxu0 0.0
  %198 = vmatpush1.msra.mxu0 0.0
  %199 = vmatprep.subr.mxu0 0.0
  %200 = vmatpush1.msra.mxu0 0.0
  %201 = vmatprep.subr.mxu0 0.0
  %202 = vmatpush1.msra.mxu0 0.0
  %203 = vmatprep.subr.mxu0 0.0
  %204 = vmatpush1.msra.mxu0 0.0
  %205 = vmatprep.subr.mxu0 0.0
  %206 = vmatpush1.msra.mxu0 0.0
  %207 = vmatprep.subr.mxu0 0.0
  %208 = vmatpush1.msra.mxu0 0.0
  %209 = vmatprep.subr.mxu0 0.0
  %210 = vmatpush1.msra.mxu0 0.0
  %211 = vmatprep.mubr.f32.mxu0 0.0
  %212 = vmatmul.mubr.f32.gmra.mrb[0].mxu0 %v30
  %v213 = vpop.f32.mrb[0].mxu0
  %v214 = vadd.f32 0.0, %v213
  %v215 = vpop.f32.mrb[0].mxu0
  %216 = vmatprep.mubr.f32.mxu0 0.0
  %217 = vmatmul.mubr.f32.gmra.mrb[0].mxu0 %v31
  %v218 = vpop.f32.mrb[0].mxu0
  %v219 = vadd.f32 0.0, %v218
  %v220 = vpop.f32.mrb[0].mxu0
  %221 = vdwg.mxu0
  %v222 = vadd.f32 %v129, %v214
  %v223 = vadd.f32 %v130, %v219
  %224 = vst [vmem:[#allocation3] sm:$0xff] %v222
  %225 = vst [vmem:[#allocation3 + $0x8] sm:$0xff] %v223
  // Predicated region
  $region26: #{complex_linear_packed.1} parent=0 // pred_check
    %p226 = pneg %p22
  $region27: #{complex_linear_packed.1} parent=0 // pred_check_branch
    %228 = sbr.rel (%p226) target = $region29
  $region28: #{complex_linear_packed.1} parent=0 // pred_region
    %v229 = vld [vmem:[#allocation2] sm:$0xff]
    %v230 = vld [vmem:[#allocation2 + $0x8] sm:$0xff]
    %v231 = vld [vmem:[%s3] sm:$0x1]
    %v233 = vlaneseq
    %v234 = vshrl.u32 %v233, 7
    %v235 = vsub.s32 0, %v234
    %v236 = vrot.slane %v231, %v235
    %v238 = vadd.f32 %v229, %v236
    %v239 = vadd.f32 %v230, %v236
    %240 = vst [vmem:[%s5] sm:$0xff] %v238
    %241 = vst [vmem:[%s5 + $0x8] sm:$0xff] %v239
    %v242 = vld [vmem:[#allocation3] sm:$0xff]
    %v243 = vld [vmem:[#allocation3 + $0x8] sm:$0xff]
    %v244 = vld [vmem:[%s4] sm:$0x1]
    %v246 = vlaneseq
    %v247 = vshrl.u32 %v246, 7
    %v248 = vsub.s32 0, %v247
    %v249 = vrot.slane %v244, %v248
    %v251 = vadd.f32 %v242, %v249
    %v252 = vadd.f32 %v243, %v249
    %253 = vst [vmem:[%s6] sm:$0xff] %v251
    %254 = vst [vmem:[%s6 + $0x8] sm:$0xff] %v252
  $region29: #{complex_linear_packed.1} parent=0 // pred_fallthru
    _
  // Predicated region
  $region30: #{complex_linear_packed.1} parent=0 // pred_check
    _
  $region31: #{complex_linear_packed.1} parent=0 // pred_check_branch
    %256 = sbr.rel (0) target = $region33
  $region32: #{complex_linear_packed.1} parent=0 // pred_region
    _
  $region33: #{complex_linear_packed.1} parent=0 // pred_fallthru
    _
  // Predicated region
  $region34: #{complex_linear_packed.1} parent=0 // pred_check
    _
  $region35: #{complex_linear_packed.1} parent=0 // pred_check_branch
    %258 = sbr.rel (0) target = $region37
  $region36: #{complex_linear_packed.1} parent=0 // pred_region
    _
  $region37: #{complex_linear_packed.1} parent=0 // pred_fallthru
    _
  // Predicated region
  $region38: #{complex_linear_packed.1} parent=0 // pred_check
    _
  $region39: #{complex_linear_packed.1} parent=0 // pred_check_branch
    %260 = sbr.rel (0) target = $region41
  $region40: #{complex_linear_packed.1} parent=0 // pred_region
    _
  $region41: #{complex_linear_packed.1} parent=0 // pred_fallthru
    _
  // Predicated region
  $region42: #{complex_linear_packed.1} parent=0 // pred_check
    _
  $region43: #{complex_linear_packed.1} parent=0 // pred_check_branch
    %262 = sbr.rel (0) target = $region45
  $region44: #{complex_linear_packed.1} parent=0 // pred_region
    _
  $region45: #{complex_linear_packed.1} parent=0 // pred_fallthru
    _

</llo_original>
